<compile_context>
chip_gen: v5e
topology: v5e:2x2
jax: 0.10.0
libtpu: 0.0.40
codegen_flags: <defaults>
</compile_context>

<pallas_src>
import jax
import jax.numpy as jnp
from jax.experimental import pallas as pl
from jax.experimental.pallas import tpu as pltpu

HIDDEN = 64
MAX_TILE_B = 2048   # rows per grid step (multiple of 8); amortizes per-step overhead


def _round_up(n, m):
    return ((n + m - 1) // m) * m


def _cdiv(a, b):
    return -(-a // b)


def _batch_tiling(batch):
    """Pick (tile_b, b_pad, n_tiles).

    * tiles are a multiple of 8 rows (sublane) and at most MAX_TILE_B
    * when the batch is large enough, force >= 2 tiles so the 'parallel' grid axis
      can be sharded across both v7x TensorCores (no-op on v5e/v6e)
    * tile size tracks ceil(B / n_tiles) so batch padding is < 8 rows per tile,
      instead of padding B up to a multiple of a fixed tile size.
    """
    n_tiles = max(1, _cdiv(batch, MAX_TILE_B))
    if batch >= 16:
        n_tiles = max(n_tiles, 2)
    tile_b = _round_up(_cdiv(batch, n_tiles), 8)
    b_pad = _round_up(batch, tile_b)
    return tile_b, b_pad, b_pad // tile_b


def policy_kernel(x_ref, w1_ref, b1_ref, w2_ref, b2_ref, w3_ref, b3_ref, mean_ref):
    cdt = w1_ref.dtype  # compute dtype of the matmul operands (f32 or bf16)
    x = x_ref[...].astype(cdt)
    # affine1 + tanh
    h1 = jnp.tanh(
        jnp.dot(x, w1_ref[...], preferred_element_type=jnp.float32) + b1_ref[...]
    )
    # affine2 + tanh
    h2 = jnp.tanh(
        jnp.dot(h1.astype(cdt), w2_ref[...], preferred_element_type=jnp.float32)
        + b2_ref[...]
    )
    # action_mean (no activation)
    mean_ref[...] = (
        jnp.dot(h2.astype(cdt), w3_ref[...], preferred_element_type=jnp.float32)
        + b3_ref[...]
    )


def policy_forward(x, params, *, use_bf16=False):
    """x: (B, num_inputs) float32. params: dict, weights (in,out), biases (1,out)."""
    num_inputs, hidden = params["w1"].shape
    num_outputs = params["w3"].shape[1]

    batch = x.shape[0]
    tile_b, b_pad, n_tiles = _batch_tiling(batch)
    x_p = jnp.pad(x, ((0, b_pad - batch), (0, 0))) if b_pad != batch else x

    w1, w2, w3 = params["w1"], params["w2"], params["w3"]
    b1, b2, b3 = params["b1"], params["b2"], params["b3"]
    if use_bf16:
        # Optional (mainly v5e, whose MXU is bf16-native): cast the streamed input and
        # the weights; accumulation and biases stay f32 inside the kernel.
        x_p = x_p.astype(jnp.bfloat16)
        w1, w2, w3 = (w.astype(jnp.bfloat16) for w in (w1, w2, w3))

    # Advisory cost estimate for the XLA scheduler (real, unpadded numbers).
    flops = 2 * b_pad * (num_inputs * hidden + hidden * hidden + hidden * num_outputs)
    transcendentals = 2 * b_pad * hidden  # two tanh layers
    bytes_accessed = (
        x_p.size * x_p.dtype.itemsize
        + sum(a.size * a.dtype.itemsize for a in (w1, b1, w2, b2, w3, b3))
        + b_pad * num_outputs * 4
    )

    mean_p = pl.pallas_call(
        policy_kernel,
        out_shape=jax.ShapeDtypeStruct((b_pad, num_outputs), jnp.float32),
        grid=(n_tiles,),
        in_specs=[
            # x: streamed one batch tile per grid step (double-buffered by Pallas)
            pl.BlockSpec((tile_b, num_inputs), lambda i: (i, 0)),
            # weights / biases: grid-invariant, block == full array, kept resident
            pl.BlockSpec((num_inputs, hidden), lambda i: (0, 0)),
            pl.BlockSpec((1, hidden), lambda i: (0, 0)),
            pl.BlockSpec((hidden, hidden), lambda i: (0, 0)),
            pl.BlockSpec((1, hidden), lambda i: (0, 0)),
            pl.BlockSpec((hidden, num_outputs), lambda i: (0, 0)),
            pl.BlockSpec((1, num_outputs), lambda i: (0, 0)),
        ],
        # unpadded output: last block dim equals the full array dim -> legal and the
        # (B, num_outputs) row-major writeback is fully contiguous.
        out_specs=pl.BlockSpec((tile_b, num_outputs), lambda i: (i, 0)),
        compiler_params=pltpu.CompilerParams(
            dimension_semantics=("parallel",),
        ),
        cost_estimate=pl.CostEstimate(
            flops=flops,
            transcendentals=transcendentals,
            bytes_accessed=bytes_accessed,
        ),
    )(x_p, w1, b1, w2, b2, w3, b3)

    mean = mean_p[:batch] if b_pad != batch else mean_p

    # action_log_std.expand_as(action_mean) and exp: independent of x -> computed once
    # from the (1, num_outputs) row outside the kernel and broadcast (view-like).
    log_std = jnp.broadcast_to(params["log_std"], mean.shape)
    std = jnp.broadcast_to(jnp.exp(params["log_std"]), mean.shape)
    return mean, log_std, std


def init_params(key, num_inputs, num_outputs, hidden=HIDDEN):
    k1, k2, k3, k4, k5 = jax.random.split(key, 5)

    def linear_init(kw, kb, fan_in, fan_out):
        # PyTorch nn.Linear default init: U(-1/sqrt(fan_in), 1/sqrt(fan_in))
        bound = 1.0 / jnp.sqrt(jnp.float32(fan_in))
        w = jax.random.uniform(kw, (fan_in, fan_out), jnp.float32, -bound, bound)
        b = jax.random.uniform(kb, (1, fan_out), jnp.float32, -bound, bound)
        return w, b

    w1, b1 = linear_init(k1, k2, num_inputs, hidden)
    w2, b2 = linear_init(k3, k4, hidden, hidden)
    w3, b3 = linear_init(k5, jax.random.fold_in(k5, 1), hidden, num_outputs)
    # Policy.__init__: action_mean.weight *= 0.1 ; action_mean.bias *= 0.0
    w3 = w3 * 0.1
    b3 = b3 * 0.0
    log_std = jnp.zeros((1, num_outputs), jnp.float32)

    return {"w1": w1, "b1": b1, "w2": w2, "b2": b2,
            "w3": w3, "b3": b3, "log_std": log_std}


def policy_forward_ref(x, p):
    h1 = jnp.tanh(x @ p["w1"] + p["b1"])
    h2 = jnp.tanh(h1 @ p["w2"] + p["b2"])
    mean = h2 @ p["w3"] + p["b3"]
    ls = jnp.broadcast_to(p["log_std"], mean.shape)
    return mean, ls, jnp.exp(ls)


if __name__ == "__main__":
    key = jax.random.PRNGKey(0)
    num_inputs, num_outputs, batch = 16, 8, 2

    pkey, xkey = jax.random.split(key)
    params = init_params(pkey, num_inputs, num_outputs)
    x = jax.random.normal(xkey, (batch, num_inputs), jnp.float32)

    mean, log_std, std = jax.block_until_ready(policy_forward(x, params))

    # sanity check against a pure-JAX reference
    mean_r, log_std_r, std_r = policy_forward_ref(x, params)
    assert mean.shape == (batch, num_outputs)
    assert jnp.allclose(mean, mean_r, atol=1e-5), "mean mismatch"
    assert jnp.allclose(log_std, log_std_r, atol=1e-6), "log_std mismatch"
    assert jnp.allclose(std, std_r, atol=1e-5), "std mismatch"

    # larger, non-tile-multiple batch exercises the multi-tile (grid >= 2) path
    xb = jax.random.normal(jax.random.fold_in(xkey, 7), (1000, num_inputs), jnp.float32)
    mb, lb, sb = jax.block_until_ready(policy_forward(xb, params))
    mbr, lbr, sbr = policy_forward_ref(xb, params)
    assert mb.shape == (1000, num_outputs)
    assert jnp.allclose(mb, mbr, atol=1e-5), "large-batch mean mismatch"
    assert jnp.allclose(sb, sbr, atol=1e-5), "large-batch std mismatch"

    # optional bf16 path (v5e-friendly); accumulation stays f32, so only small drift
    mh, _, _ = jax.block_until_ready(policy_forward(xb, params, use_bf16=True))
    assert jnp.allclose(mh, mbr, atol=3e-2, rtol=3e-2), "bf16 mean mismatch"

    print("KERNEL_OK")
</pallas_src>

<mosaic_0001>
module attributes {stable_mosaic.version = 11 : i64} {
  func.func @policy_kernel(%arg0: i32, %arg1: memref<8x16xf32, #tpu.memory_space<vmem>>, %arg2: memref<16x64xf32, #tpu.memory_space<vmem>>, %arg3: memref<1x64xf32, #tpu.memory_space<vmem>>, %arg4: memref<64x64xf32, #tpu.memory_space<vmem>>, %arg5: memref<1x64xf32, #tpu.memory_space<vmem>>, %arg6: memref<64x8xf32, #tpu.memory_space<vmem>>, %arg7: memref<1x8xf32, #tpu.memory_space<vmem>>, %arg8: memref<8x8xf32, #tpu.memory_space<vmem>>) attributes {dimension_semantics = [#tpu.dimension_semantics<parallel>], iteration_bounds = array<i64: 1>, scalar_prefetch = 0 : i64, scratch_operands = 0 : i64, tpu.core_type = #tpu.core_type<tc>, window_params = [{transform_indices = @transform_0, window_bounds = array<i64: 8, 16>}, {pipeline_mode = #tpu.pipeline_mode<synchronous>, transform_indices = @transform_1, window_bounds = array<i64: 16, 64>}, {pipeline_mode = #tpu.pipeline_mode<synchronous>, transform_indices = @transform_2, window_bounds = array<i64: 1, 64>}, {pipeline_mode = #tpu.pipeline_mode<synchronous>, transform_indices = @transform_3, window_bounds = array<i64: 64, 64>}, {pipeline_mode = #tpu.pipeline_mode<synchronous>, transform_indices = @transform_4, window_bounds = array<i64: 1, 64>}, {pipeline_mode = #tpu.pipeline_mode<synchronous>, transform_indices = @transform_5, window_bounds = array<i64: 64, 8>}, {pipeline_mode = #tpu.pipeline_mode<synchronous>, transform_indices = @transform_6, window_bounds = array<i64: 1, 8>}, {transform_indices = @transform_7, window_bounds = array<i64: 8, 8>}]} {
    %c0 = arith.constant 0 : index
    %c0_0 = arith.constant 0 : index
    %0 = vector.load %arg1[%c0, %c0_0] : memref<8x16xf32, #tpu.memory_space<vmem>>, vector<8x16xf32>
    %c0_1 = arith.constant 0 : index
    %c0_2 = arith.constant 0 : index
    %1 = vector.load %arg2[%c0_1, %c0_2] : memref<16x64xf32, #tpu.memory_space<vmem>>, vector<16x64xf32>
    %cst = arith.constant dense<0.000000e+00> : vector<8x64xf32>
    %2 = tpu.matmul %0, %1, %cst {dimension_numbers = #tpu.dot_dimension_numbers<[1], [0], [0], [1], [0, 0, 1, 1], [], []>} : vector<8x16xf32>, vector<16x64xf32>, vector<8x64xf32> -> vector<8x64xf32>
    %c0_3 = arith.constant 0 : index
    %c0_4 = arith.constant 0 : index
    %3 = vector.load %arg3[%c0_3, %c0_4] : memref<1x64xf32, #tpu.memory_space<vmem>>, vector<1x64xf32>
    %4 = vector.broadcast %3 : vector<1x64xf32> to vector<8x64xf32>
    %5 = arith.addf %2, %4 : vector<8x64xf32>
    %6 = math.tanh %5 : vector<8x64xf32>
    %c0_5 = arith.constant 0 : index
    %c0_6 = arith.constant 0 : index
    %7 = vector.load %arg4[%c0_5, %c0_6] : memref<64x64xf32, #tpu.memory_space<vmem>>, vector<64x64xf32>
    %cst_7 = arith.constant dense<0.000000e+00> : vector<8x64xf32>
    %8 = tpu.matmul %6, %7, %cst_7 {dimension_numbers = #tpu.dot_dimension_numbers<[1], [0], [0], [1], [0, 0, 1, 1], [], []>} : vector<8x64xf32>, vector<64x64xf32>, vector<8x64xf32> -> vector<8x64xf32>
    %c0_8 = arith.constant 0 : index
    %c0_9 = arith.constant 0 : index
    %9 = vector.load %arg5[%c0_8, %c0_9] : memref<1x64xf32, #tpu.memory_space<vmem>>, vector<1x64xf32>
    %10 = vector.broadcast %9 : vector<1x64xf32> to vector<8x64xf32>
    %11 = arith.addf %8, %10 : vector<8x64xf32>
    %12 = math.tanh %11 : vector<8x64xf32>
    %c0_10 = arith.constant 0 : index
    %c0_11 = arith.constant 0 : index
    %13 = vector.load %arg6[%c0_10, %c0_11] : memref<64x8xf32, #tpu.memory_space<vmem>>, vector<64x8xf32>
    %cst_12 = arith.constant dense<0.000000e+00> : vector<8x8xf32>
    %14 = tpu.matmul %12, %13, %cst_12 {dimension_numbers = #tpu.dot_dimension_numbers<[1], [0], [0], [1], [0, 0, 1, 1], [], []>} : vector<8x64xf32>, vector<64x8xf32>, vector<8x8xf32> -> vector<8x8xf32>
    %c0_13 = arith.constant 0 : index
    %c0_14 = arith.constant 0 : index
    %15 = vector.load %arg7[%c0_13, %c0_14] : memref<1x8xf32, #tpu.memory_space<vmem>>, vector<1x8xf32>
    %16 = vector.broadcast %15 : vector<1x8xf32> to vector<8x8xf32>
    %17 = arith.addf %14, %16 : vector<8x8xf32>
    %c0_15 = arith.constant 0 : index
    %c0_16 = arith.constant 0 : index
    %18 = vector.load %arg8[%c0_15, %c0_16] : memref<8x8xf32, #tpu.memory_space<vmem>>, vector<8x8xf32>
    tpu.vector_store %arg8[%c0_15, %c0_16], %17 {strides = array<i32>} : memref<8x8xf32, #tpu.memory_space<vmem>>, vector<8x8xf32>,
    return
  }
  func.func @transform_0(%arg0: i32) -> (i32, i32) {
    %c0_i32 = arith.constant 0 : i32
    %c0_i32_0 = arith.constant 0 : i32
    return %arg0, %c0_i32 : i32, i32
  }
  func.func @transform_1(%arg0: i32) -> (i32, i32) {
    %c0_i32 = arith.constant 0 : i32
    %c0_i32_0 = arith.constant 0 : i32
    %c0_i32_1 = arith.constant 0 : i32
    return %c0_i32, %c0_i32_0 : i32, i32
  }
  func.func @transform_2(%arg0: i32) -> (i32, i32) {
    %c0_i32 = arith.constant 0 : i32
    %c0_i32_0 = arith.constant 0 : i32
    %c0_i32_1 = arith.constant 0 : i32
    return %c0_i32, %c0_i32_0 : i32, i32
  }
  func.func @transform_3(%arg0: i32) -> (i32, i32) {
    %c0_i32 = arith.constant 0 : i32
    %c0_i32_0 = arith.constant 0 : i32
    %c0_i32_1 = arith.constant 0 : i32
    return %c0_i32, %c0_i32_0 : i32, i32
  }
  func.func @transform_4(%arg0: i32) -> (i32, i32) {
    %c0_i32 = arith.constant 0 : i32
    %c0_i32_0 = arith.constant 0 : i32
    %c0_i32_1 = arith.constant 0 : i32
    return %c0_i32, %c0_i32_0 : i32, i32
  }
  func.func @transform_5(%arg0: i32) -> (i32, i32) {
    %c0_i32 = arith.constant 0 : i32
    %c0_i32_0 = arith.constant 0 : i32
    %c0_i32_1 = arith.constant 0 : i32
    return %c0_i32, %c0_i32_0 : i32, i32
  }
  func.func @transform_6(%arg0: i32) -> (i32, i32) {
    %c0_i32 = arith.constant 0 : i32
    %c0_i32_0 = arith.constant 0 : i32
    %c0_i32_1 = arith.constant 0 : i32
    return %c0_i32, %c0_i32_0 : i32, i32
  }
  func.func @transform_7(%arg0: i32) -> (i32, i32) {
    %c0_i32 = arith.constant 0 : i32
    %c0_i32_0 = arith.constant 0 : i32
    return %arg0, %c0_i32 : i32, i32
  }
}

</mosaic_0001>

<llo_original>
// kernel: tpu_custom_call.1
$region0: #{tpu_custom_call.1}
  #allocation0 [shape = 'u32[]', space=smem, size = 0x4, offset = 0x4, fixed_abs, tag = 'smem constant byte address 0x4 - core index']
  #allocation1 [shape = 'u32[72,128]{1,0:T(1,128)}', space=vmem, size = 0x9000, scoped, tag = 'internal scratch']
  %s0 = inlined_call_operand.vmem [shape: f32[8,16], index: 0, kind: input, shape index: {}]
  %s1 = inlined_call_operand.hbm [shape: f32[16,64], index: 1, kind: input, shape index: {}]
  %s2 = inlined_call_operand.vmem [shape: f32[1,64], index: 2, kind: input, shape index: {}]
  %s3 = inlined_call_operand.vmem [shape: f32[64,64], index: 3, kind: input, shape index: {}]
  %s4 = inlined_call_operand.vmem [shape: f32[1,64], index: 4, kind: input, shape index: {}]
  %s5 = inlined_call_operand.vmem [shape: f32[64,8], index: 5, kind: input, shape index: {}]
  %s6 = inlined_call_operand.vmem [shape: f32[1,8], index: 6, kind: input, shape index: {}]
  %s7 = inlined_call_operand.hbm [shape: f32[8,8], index: 7, kind: output, shape index: {}]
  %s8 = sld [smem:[#allocation0]]
  $region42: #{tpu_custom_call.1} parent=0
    _
  %s10 = ssub.s32 1, %s8
  %s11 = scalar_select 0, %s10, %s8
  $region1: #{tpu_custom_call.1} parent=0
    #allocation2 [shape = 'u8[8192]{0}', space=vmem, size = 0x2000, scoped, tag = 'input window, operand 1, single buffered']
    #allocation3 [shape = 's32[1]{0}', space=sflag, size = 0x4, scoped, tag = 'scoped memory for tpu_custom_call.1']
    #allocation4 [shape = 's32[1]{0}', space=sflag, size = 0x4, scoped, tag = 'scoped memory for tpu_custom_call.1']
    #allocation5 [shape = 'u8[4096]{0}', space=vmem, size = 0x1000, scoped, tag = 'output window, operand 0, single buffered']
    %12 = vsyncpa [#allocation3], 0
    %13 = vsyncpa [#allocation4], 0
    // Predicated region
    $region2: #{tpu_custom_call.1} parent=1 // pred_check
      _
    $region3: #{tpu_custom_call.1} parent=1 // pred_check_branch
      %15 = sbr.rel (0) target = $region5
    $region4: #{tpu_custom_call.1} parent=1 // pred_region
      _
    $region5: #{tpu_custom_call.1} parent=1 // pred_fallthru
      _
    // Predicated region
    $region6: #{tpu_custom_call.1} parent=1 // pred_check
      _
    $region7: #{tpu_custom_call.1} parent=1 // pred_check_branch
      %17 = sbr.rel (0) target = $region9
    $region8: #{tpu_custom_call.1} parent=1 // pred_region
      %19 = vsyncadd [#allocation3], 0
      %s20 = sshll.u32 %s1, 4
      %s21 = int_to_ptr.hbm [resolvable:$true] %s20
      %s22 = sshll.u32 [#allocation2], 4
      %s23 = int_to_ptr.vmem [resolvable:$true] %s22
      %28 = dma.hbm_to_vmem [thread:$0]  %s21, 256, %s23, [#allocation3], 128, 128, 8
    $region9: #{tpu_custom_call.1} parent=1 // pred_fallthru
      _
    // Predicated region
    $region10: #{tpu_custom_call.1} parent=1 // pred_check
      _
    $region11: #{tpu_custom_call.1} parent=1 // pred_check_branch
      %30 = sbr.rel (0) target = $region13
    $region12: #{tpu_custom_call.1} parent=1 // pred_region
      _
    $region13: #{tpu_custom_call.1} parent=1 // pred_fallthru
      _
    // Predicated region
    $region14: #{tpu_custom_call.1} parent=1 // pred_check
      _
    $region15: #{tpu_custom_call.1} parent=1 // pred_check_branch
      %32 = sbr.rel (0) target = $region17
    $region16: #{tpu_custom_call.1} parent=1 // pred_region
      _
    $region17: #{tpu_custom_call.1} parent=1 // pred_fallthru
      _
    // Predicated region
    $region18: #{tpu_custom_call.1} parent=1 // pred_check
      _
    $region19: #{tpu_custom_call.1} parent=1 // pred_check_branch
      %34 = sbr.rel (0) target = $region21
    $region20: #{tpu_custom_call.1} parent=1 // pred_region
      _
    $region21: #{tpu_custom_call.1} parent=1 // pred_fallthru
      _
    // Predicated region
    $region22: #{tpu_custom_call.1} parent=1 // pred_check
      _
    $region23: #{tpu_custom_call.1} parent=1 // pred_check_branch
      %36 = sbr.rel (0) target = $region25
    $region24: #{tpu_custom_call.1} parent=1 // pred_region
      _
    $region25: #{tpu_custom_call.1} parent=1 // pred_fallthru
      _
    // Predicated region
    $region26: #{tpu_custom_call.1} parent=1 // pred_check
      _
    $region27: #{tpu_custom_call.1} parent=1 // pred_check_branch
      %38 = sbr.rel (0) target = $region29
    $region28: #{tpu_custom_call.1} parent=1 // pred_region
      _
    $region29: #{tpu_custom_call.1} parent=1 // pred_fallthru
      _
    // Predicated region
    $region30: #{tpu_custom_call.1} parent=1 // pred_check
      _
    $region31: #{tpu_custom_call.1} parent=1 // pred_check_branch
      %40 = sbr.rel (0) target = $region33
    $region32: #{tpu_custom_call.1} parent=1 // pred_region
      %42 = dma.done [#allocation3], 256
    $region33: #{tpu_custom_call.1} parent=1 // pred_fallthru
      _
    %v43 = vld [vmem:[%s0] sm:$0xff]
    %v44 = vld [vmem:[#allocation2] sm:$0xff]
    %v45 = vld [vmem:[#allocation2 + $0x8] sm:$0xff]
    %v46 = vld [vmem:[%s2] sm:$0x1]
    %v48 = vperm.slane %v46, 0
    %vm50 = vcmask 130048
    %v52 = vsel %vm50, %v43, 0
    %54 = vmatpush.msra.mxu0 0.0
    %55 = vmatpush.msra.mxu0 0.0
    %56 = vmatpush.msra.mxu0 0.0
    %57 = vmatpush.msra.mxu0 0.0
    %58 = vmatpush.msra.mxu0 0.0
    %59 = vmatpush.msra.mxu0 0.0
    %60 = vmatpush.msra.mxu0 0.0
    %61 = vmatpush.msra.mxu0 0.0
    %62 = vmatpush.msra.mxu0 0.0
    %63 = vmatpush.msra.mxu0 0.0
    %64 = vmatpush.msra.mxu0 0.0
    %65 = vmatpush.msra.mxu0 0.0
    %66 = vmatpush.msra.mxu0 0.0
    %67 = vmatpush.msra.mxu0 0.0
    %68 = vmatpush.msra.mxu0 %v45
    %69 = vmatpush.msra.mxu0 %v44
    %70 = vmatmul.f32.gmra.mxu0 %v52
    %v71 = vpop.f32.mrf.mxu0
    %v72 = vadd.f32 %v48, %v71
    %73 = vdwg.mxu0
    %v74 = vtanh.pop %v72
    %v75 = vld [vmem:[%s3] sm:$0xff]
    %v76 = vld [vmem:[%s3 + $0x8] sm:$0xff]
    %v77 = vld [vmem:[%s3 + $0x10] sm:$0xff]
    %v78 = vld [vmem:[%s3 + $0x18] sm:$0xff]
    %v79 = vld [vmem:[%s3 + $0x20] sm:$0xff]
    %v80 = vld [vmem:[%s3 + $0x28] sm:$0xff]
    %v81 = vld [vmem:[%s3 + $0x30] sm:$0xff]
    %v82 = vld [vmem:[%s3 + $0x38] sm:$0xff]
    %v83 = vld [vmem:[%s4] sm:$0x1]
    %v85 = vperm.slane %v83, 0
    %vm87 = vcmask 523264
    %v89 = vsel %vm87, %v74, 0
    %91 = vmatpush.msra.mxu0 0.0
    %92 = vmatpush.msra.mxu0 0.0
    %93 = vmatpush.msra.mxu0 0.0
    %94 = vmatpush.msra.mxu0 0.0
    %95 = vmatpush.msra.mxu0 0.0
    %96 = vmatpush.msra.mxu0 0.0
    %97 = vmatpush.msra.mxu0 0.0
    %98 = vmatpush.msra.mxu0 0.0
    %99 = vmatpush.msra.mxu0 %v82
    %100 = vmatpush.msra.mxu0 %v81
    %101 = vmatpush.msra.mxu0 %v80
    %102 = vmatpush.msra.mxu0 %v79
    %103 = vmatpush.msra.mxu0 %v78
    %104 = vmatpush.msra.mxu0 %v77
    %105 = vmatpush.msra.mxu0 %v76
    %106 = vmatpush.msra.mxu0 %v75
    %107 = vmatmul.f32.gmra.mxu0 %v89
    %v108 = vpop.f32.mrf.mxu0
    %v109 = vadd.f32 %v85, %v108
    %110 = vdwg.mxu0
    %v111 = vtanh.pop %v109
    %v112 = vld [vmem:[%s5] sm:$0xff]
    %v113 = vld [vmem:[%s5 + $0x8] sm:$0xff]
    %v114 = vld [vmem:[%s5 + $0x10] sm:$0xff]
    %v115 = vld [vmem:[%s5 + $0x18] sm:$0xff]
    %v116 = vld [vmem:[%s5 + $0x20] sm:$0xff]
    %v117 = vld [vmem:[%s5 + $0x28] sm:$0xff]
    %v118 = vld [vmem:[%s5 + $0x30] sm:$0xff]
    %v119 = vld [vmem:[%s5 + $0x38] sm:$0xff]
    %v120 = vld [vmem:[%s6] sm:$0x1]
    %v122 = vperm.slane %v120, 0
    %v125 = vsel %vm87, %v111, 0
    %127 = vmatpush.msra.mxu0 0.0
    %128 = vmatpush.msra.mxu0 0.0
    %129 = vmatpush.msra.mxu0 0.0
    %130 = vmatpush.msra.mxu0 0.0
    %131 = vmatpush.msra.mxu0 0.0
    %132 = vmatpush.msra.mxu0 0.0
    %133 = vmatpush.msra.mxu0 0.0
    %134 = vmatpush.msra.mxu0 0.0
    %135 = vmatpush.msra.mxu0 %v119
    %136 = vmatpush.msra.mxu0 %v118
    %137 = vmatpush.msra.mxu0 %v117
    %138 = vmatpush.msra.mxu0 %v116
    %139 = vmatpush.msra.mxu0 %v115
    %140 = vmatpush.msra.mxu0 %v114
    %141 = vmatpush.msra.mxu0 %v113
    %142 = vmatpush.msra.mxu0 %v112
    %143 = vmatmul.f32.gmra.mxu0 %v125
    %v144 = vpop.f32.mrf.mxu0
    %v145 = vadd.f32 %v122, %v144
    %146 = vdwg.mxu0
    %vm147 = vcmask 64512
    %148 = vst.msk [vmem:[#allocation5] sm:$0xff] %vm147, %v145
    // Predicated region
    $region34: #{tpu_custom_call.1} parent=1 // pred_check
      _
    $region35: #{tpu_custom_call.1} parent=1 // pred_check_branch
      %150 = sbr.rel (0) target = $region37
    $region36: #{tpu_custom_call.1} parent=1 // pred_region
      %152 = vsyncadd [#allocation4], 0
      %s154 = sshll.u32 [#allocation5], 4
      %s155 = int_to_ptr.vmem [resolvable:$true] %s154
      %s156 = sshll.u32 %s7, 4
      %s157 = int_to_ptr.hbm [resolvable:$true] %s156
      %159 = dma.vmem_to_hbm [thread:$0]  %s155, 128, %s157, [#allocation4]
    $region37: #{tpu_custom_call.1} parent=1 // pred_fallthru
      _
    // Predicated region
    $region38: #{tpu_custom_call.1} parent=1 // pred_check
      _
    $region39: #{tpu_custom_call.1} parent=1 // pred_check_branch
      %161 = sbr.rel (0) target = $region41
    $region40: #{tpu_custom_call.1} parent=1 // pred_region
      %163 = dma.done [#allocation4], 128
    $region41: #{tpu_custom_call.1} parent=1 // pred_fallthru
      _
    %164 = vsyncpa [#allocation3], 1
    %165 = vsyncpa [#allocation4], 1

</llo_original>
